<compile_context>
chip_gen: v6e
topology: v6e:2x2x1
jax: 0.10.0
libtpu: 0.0.40
codegen_flags: <defaults>
</compile_context>

<pallas_src>
import functools

import jax
import jax.numpy as jnp
from jax.experimental import pallas as pl
from jax.experimental.pallas import tpu as pltpu

NEG_INF = -1e30


def _vmem():
    return pl.BlockSpec(memory_space=pltpu.MemorySpace.VMEM)


def _elu(v):
    return jnp.where(v > 0, v, jnp.exp(jnp.minimum(v, 0.0)) - 1.0)


# ---------------------------------------------------------------------------
# Kernel 1: projection
#   x1    = h @ W             [N, HC]
#   a_src = h @ (W @ A_src)   [N, H]
#   a_dst = h @ (W @ A_dst)   [N, H]
# Three small dots, all outputs bf16 (no fused-output slicing / transpose).
# ---------------------------------------------------------------------------
def gat_project_kernel(h_ref, wl_ref, ws_ref, wd_ref, x1_ref, asrc_ref, adst_ref):
    h = h_ref[...]
    x1_ref[...] = jnp.dot(h, wl_ref[...],
                          preferred_element_type=jnp.float32).astype(x1_ref.dtype)
    asrc_ref[...] = jnp.dot(h, ws_ref[...],
                            preferred_element_type=jnp.float32).astype(asrc_ref.dtype)
    adst_ref[...] = jnp.dot(h, wd_ref[...],
                            preferred_element_type=jnp.float32).astype(adst_ref.dtype)


# ---------------------------------------------------------------------------
# Kernel 2: attention + aggregation for one destination-row tile (the hot loop)
# ---------------------------------------------------------------------------
def gat_attn_kernel(x1_ref, asrc_t_ref, adst_ref, mask_ref, ev_ref,
                    ke_ref, hm_ref, b_ref, out_ref, *, H):
    x1 = x1_ref[...]          # [N, HC]  bf16  (all source rows, grid-invariant)
    asrc_t = asrc_t_ref[...]  # [H, N]   bf16
    adst = adst_ref[...]      # [T, H]   bf16  (this tile's destination rows)
    mask = mask_ref[...]      # [T, N]   bf16  additive 0 / -1e30
    ev = ev_ref[...]          # [T, N]   bf16  densified edge attribute
    hm = hm_ref[...]          # [H, HC]  bf16  0/1 per-head column masks

    acc = None
    for hh in range(H):
        ke_h = ke_ref[hh].astype(jnp.bfloat16)           # per-head edge scalar (SMEM)
        # raw logit = a_dst[i] + a_src[j] + edge_val * k_edge[h]   (all bf16)
        logit = adst[:, hh:hh + 1] + asrc_t[hh:hh + 1, :] + ev * ke_h
        logit = jnp.maximum(logit, logit * 0.2)          # LeakyReLU(0.2): mul + max
        logit = logit + mask                             # mask AFTER LeakyReLU (PyG)
        m = jnp.max(logit, axis=1, keepdims=True)        # bf16 (exact selection)
        p = jnp.exp(logit - m)                           # bf16 EUP; masked -> 0
        l = jnp.sum(p, axis=1, keepdims=True, dtype=jnp.float32)   # f32 row-sum
        inv = pl.reciprocal(l, approx=True)              # EUP; applied post-matmul
        # masked full-width bf16 matmul (only head hh's C columns survive).
        # Fine while HC is small (MXU slack); for HC >= 128 switch to per-head
        # column slices / block-diagonal RHS instead of H-fold redundant MACs.
        contrib = jnp.dot(p, x1 * hm[hh:hh + 1, :],
                          preferred_element_type=jnp.float32) * inv
        acc = contrib if acc is None else acc + contrib

    # TODO(synk): F.dropout / GATConv attention dropout are identity (inference).
    out_ref[...] = _elu(acc + b_ref[...]).astype(out_ref.dtype)


# ---------------------------------------------------------------------------
# Kernel 3: global mean pool + MLP head
# ---------------------------------------------------------------------------
def head_kernel(h2_ref, pool_ref, theta_ref, logh_ref,
                f1wf_ref, f1wt_ref, f1wl_ref, f1b_ref, f2w_ref, f2b_ref,
                out_ref):
    pooled = jnp.dot(pool_ref[...], h2_ref[...].astype(jnp.float32),
                     preferred_element_type=jnp.float32)
    # fc1 on cat([pooled, theta, log_h]) — weight pre-split to avoid in-kernel concat
    z = (jnp.dot(pooled, f1wf_ref[...], preferred_element_type=jnp.float32)
         + jnp.dot(theta_ref[...], f1wt_ref[...], preferred_element_type=jnp.float32)
         + jnp.dot(logh_ref[...], f1wl_ref[...], preferred_element_type=jnp.float32)
         + f1b_ref[...])
    z = jnp.maximum(z, 0.0)                               # ReLU
    out_ref[...] = (jnp.dot(z, f2w_ref[...], preferred_element_type=jnp.float32)
                    + f2b_ref[...])


# ---------------------------------------------------------------------------
# Wrappers
# ---------------------------------------------------------------------------
def gat_conv_layer(h, wl, ws, wd, mask_bias, ev, ke, head_mask, bias,
                   *, H, HC, tile_n):
    """One GATConv (heads concatenated) + ELU on a dense adjacency, eval mode."""
    N = h.shape[0]

    x1, asrc, adst = pl.pallas_call(
        gat_project_kernel,
        out_shape=(jax.ShapeDtypeStruct((N, HC), jnp.bfloat16),
                   jax.ShapeDtypeStruct((N, H), jnp.bfloat16),
                   jax.ShapeDtypeStruct((N, H), jnp.bfloat16)),
        in_specs=[_vmem()] * 4,
        out_specs=(_vmem(), _vmem(), _vmem()),
    )(h, wl, ws, wd)
    asrc_t = asrc.T   # cheap O(N*H) wrapper transpose keeps the kernel XLU-free

    # Per-step VMEM working set (bytes): streamed mask/ev tiles double-buffered;
    # x1 / a_src^T / masks are grid-invariant (single-buffer them via
    # pipeline_mode=pl.Buffered(1) at production scale to reclaim VMEM).
    ws_bytes = (2 * (2 * tile_n * N * 2)        # mask + ev tiles, 2 buffers, bf16
                + 2 * (N * HC * 2)              # resident x1 (bf16)
                + 2 * (H * N * 2)               # a_src^T (bf16)
                + 2 * (tile_n * H * 2)          # a_dst tile (bf16)
                + 2 * (tile_n * HC * 2)         # output tile (bf16)
                + 2 * (H * HC * 2 + HC * 4))    # head masks + bias
    vmem_limit = int(min(max(1.5 * ws_bytes + (2 << 20), 32 << 20), 100 << 20))

    # Destination-row grid: O(N^2) operands streamed tile-by-tile; x1 / a_src^T
    # stay VMEM-resident.  For very large N, move to a 2-D (dst-tile x src-tile)
    # flash-style online-softmax grid so the working set stops scaling with N.
    grid = (N // tile_n,)
    return pl.pallas_call(
        functools.partial(gat_attn_kernel, H=H),
        out_shape=jax.ShapeDtypeStruct((N, HC), jnp.bfloat16),
        grid=grid,
        in_specs=[
            pl.BlockSpec((N, HC), lambda i: (0, 0)),            # x1 (all sources)
            pl.BlockSpec((H, N), lambda i: (0, 0)),             # a_src^T
            pl.BlockSpec((tile_n, H), lambda i: (i, 0)),        # a_dst rows
            pl.BlockSpec((tile_n, N), lambda i: (i, 0)),        # additive mask rows
            pl.BlockSpec((tile_n, N), lambda i: (i, 0)),        # edge-value rows
            pl.BlockSpec((H,), lambda i: (0,),
                         memory_space=pltpu.MemorySpace.SMEM),  # k_edge per head
            pl.BlockSpec((H, HC), lambda i: (0, 0)),            # head masks
            pl.BlockSpec((1, HC), lambda i: (0, 0)),            # bias
        ],
        out_specs=pl.BlockSpec((tile_n, HC), lambda i: (i, 0)),
        compiler_params=pltpu.CompilerParams(
            dimension_semantics=("parallel",),                  # both TCs on v7x
            vmem_limit_bytes=vmem_limit),
    )(x1, asrc_t, adst, mask_bias, ev, ke, head_mask, bias)


def gat_model_forward(x, mask_bias, ev, pool, theta, log_h, params, *, H, C, tile_n):
    HC = H * C
    (wl1, ws1, wd1, ke1, b1, wl2, ws2, wd2, ke2, b2,
     f1wf, f1wt, f1wl, f1b, f2w, f2b, head_mask) = params

    h1 = gat_conv_layer(x, wl1, ws1, wd1, mask_bias, ev, ke1, head_mask, b1,
                        H=H, HC=HC, tile_n=tile_n)
    h2 = gat_conv_layer(h1, wl2, ws2, wd2, mask_bias, ev, ke2, head_mask, b2,
                        H=H, HC=HC, tile_n=tile_n)

    B = pool.shape[0]
    out_ch = f2w.shape[1]
    return pl.pallas_call(
        head_kernel,
        out_shape=jax.ShapeDtypeStruct((B, out_ch), jnp.float32),
        in_specs=[_vmem()] * 10,
        out_specs=_vmem(),
    )(h2, pool, theta, log_h, f1wf, f1wt, f1wl, f1b, f2w, f2b)


if __name__ == "__main__":
    # Model hyperparameters (mirrors GATModel(in_channels, hidden, out, num_heads=4))
    Fin, Ch, H, out_ch = 6, 8, 4, 1
    HC = H * Ch

    # Small batched graph: 2 graphs x 8 nodes, bidirectional ring inside each graph
    B, nodes_per_graph = 2, 8
    N = B * nodes_per_graph
    TILE_N = 8  # destination-row tile: multiple of 8, divides N (grid of 2 here)

    key = jax.random.PRNGKey(0)
    ks = jax.random.split(key, 24)

    x = jax.random.normal(ks[0], (N, Fin), jnp.float32)

    src_l, dst_l = [], []
    for b in range(B):
        off = b * nodes_per_graph
        for n in range(nodes_per_graph):
            src_l += [off + n, off + (n + 1) % nodes_per_graph]
            dst_l += [off + (n + 1) % nodes_per_graph, off + n]
    src = jnp.array(src_l, jnp.int32)
    dst = jnp.array(dst_l, jnp.int32)
    E = src.shape[0]
    edge_attr = jax.random.normal(ks[1], (E, 1), jnp.float32)

    # Densify: adj[i, j] = edge j -> i; self-loops with fill_value='mean' (PyG default)
    adj = jnp.zeros((N, N), jnp.float32).at[dst, src].set(1.0)
    ev = jnp.zeros((N, N), jnp.float32).at[dst, src].set(edge_attr[:, 0])
    deg = jnp.zeros((N,), jnp.float32).at[dst].add(1.0)
    esum = jnp.zeros((N,), jnp.float32).at[dst].add(edge_attr[:, 0])
    self_attr = jnp.where(deg > 0, esum / jnp.maximum(deg, 1.0), 0.0)
    ii = jnp.arange(N)
    adj = adj.at[ii, ii].set(1.0)
    ev = ev.at[ii, ii].set(self_attr)

    # Fold edge mask into an additive bias; ship O(N^2) operands + x as bf16.
    # Self-loops guarantee every softmax row has >= 1 unmasked entry.
    mask_bias = jnp.where(adj > 0, 0.0, NEG_INF).astype(jnp.bfloat16)
    ev_bf16 = ev.astype(jnp.bfloat16)
    x_bf16 = x.astype(jnp.bfloat16)

    # global_mean_pool matrix
    batch = jnp.repeat(jnp.arange(B), nodes_per_graph)
    counts = jnp.zeros((B,), jnp.float32).at[batch].add(1.0)
    pool = (jax.nn.one_hot(batch, B, dtype=jnp.float32) / counts[None, :]).T  # [B, N]

    theta = jax.random.normal(ks[2], (B, 1), jnp.float32)   # data.theta.reshape(-1, 1)
    log_h = jax.random.normal(ks[3], (B, 1), jnp.float32)   # data.log_h.reshape(-1, 1)

    # ----- deterministic synthetic parameters -----
    s = 0.2

    def make_att_mat(att):  # att: [H, C] -> block-diag [H*C, H]
        m = jnp.zeros((HC, H), jnp.float32)
        for h in range(H):
            m = m.at[h * Ch:(h + 1) * Ch, h].set(att[h])
        return m

    def split_weights(w, att_src, att_dst):
        # lin weight plus pre-folded attention projections, all bf16
        wl = w.astype(jnp.bfloat16)
        ws = (w @ make_att_mat(att_src)).astype(jnp.bfloat16)
        wd = (w @ make_att_mat(att_dst)).astype(jnp.bfloat16)
        return wl, ws, wd

    # conv1
    w1 = s * jax.random.normal(ks[4], (Fin, HC), jnp.float32)
    att_src1 = s * jax.random.normal(ks[5], (H, Ch), jnp.float32)
    att_dst1 = s * jax.random.normal(ks[6], (H, Ch), jnp.float32)
    att_edge1 = s * jax.random.normal(ks[7], (H, Ch), jnp.float32)
    w_edge1 = s * jax.random.normal(ks[8], (HC,), jnp.float32)   # lin_edge (edge_dim=1)
    b1 = s * jax.random.normal(ks[9], (1, HC), jnp.float32)
    wl1, ws1, wd1 = split_weights(w1, att_src1, att_dst1)
    ke1 = jnp.sum(w_edge1.reshape(H, Ch) * att_edge1, axis=1)    # [H] per-head edge scalar

    # conv2
    w2 = s * jax.random.normal(ks[10], (HC, HC), jnp.float32)
    att_src2 = s * jax.random.normal(ks[11], (H, Ch), jnp.float32)
    att_dst2 = s * jax.random.normal(ks[12], (H, Ch), jnp.float32)
    att_edge2 = s * jax.random.normal(ks[13], (H, Ch), jnp.float32)
    w_edge2 = s * jax.random.normal(ks[14], (HC,), jnp.float32)
    b2 = s * jax.random.normal(ks[15], (1, HC), jnp.float32)
    wl2, ws2, wd2 = split_weights(w2, att_src2, att_dst2)
    ke2 = jnp.sum(w_edge2.reshape(H, Ch) * att_edge2, axis=1)

    # 0/1 masks selecting each head's C output columns (no lane slicing in kernel)
    head_mask = jnp.zeros((H, HC), jnp.float32)
    for h in range(H):
        head_mask = head_mask.at[h, h * Ch:(h + 1) * Ch].set(1.0)
    head_mask = head_mask.astype(jnp.bfloat16)

    # fc1 (input = [pooled(HC) | theta(1) | log_h(1)]) and fc2
    fc1_w = s * jax.random.normal(ks[16], (HC + 2, Ch), jnp.float32)
    fc1_b = s * jax.random.normal(ks[17], (1, Ch), jnp.float32)
    f1wf, f1wt, f1wl = fc1_w[:HC], fc1_w[HC:HC + 1], fc1_w[HC + 1:HC + 2]
    fc2_w = s * jax.random.normal(ks[18], (Ch, out_ch), jnp.float32)
    fc2_b = s * jax.random.normal(ks[19], (1, out_ch), jnp.float32)

    params = (wl1, ws1, wd1, ke1, b1, wl2, ws2, wd2, ke2, b2,
              f1wf, f1wt, f1wl, fc1_b, fc2_w, fc2_b, head_mask)

    rho = gat_model_forward(x_bf16, mask_bias, ev_bf16, pool, theta, log_h,
                            params, H=H, C=Ch, tile_n=TILE_N)
    rho = jnp.squeeze(rho, -1)   # matches torch `.squeeze(-1)` (out_channels == 1)
    jax.block_until_ready(rho)
    print("KERNEL_OK")
</pallas_src>

<mosaic_0001>
module attributes {stable_mosaic.version = 11 : i64} {
  func.func @gat_project_kernel(%arg0: memref<16x6xbf16, #tpu.memory_space<vmem>>, %arg1: memref<6x32xbf16, #tpu.memory_space<vmem>>, %arg2: memref<6x4xbf16, #tpu.memory_space<vmem>>, %arg3: memref<6x4xbf16, #tpu.memory_space<vmem>>, %arg4: memref<16x32xbf16, #tpu.memory_space<vmem>>, %arg5: memref<16x4xbf16, #tpu.memory_space<vmem>>, %arg6: memref<16x4xbf16, #tpu.memory_space<vmem>>) attributes {dimension_semantics = [], scalar_prefetch = 0 : i64, scratch_operands = 0 : i64, tpu.core_type = #tpu.core_type<tc>} {
    %c0 = arith.constant 0 : index
    %c0_0 = arith.constant 0 : index
    %0 = vector.load %arg0[%c0, %c0_0] : memref<16x6xbf16, #tpu.memory_space<vmem>>, vector<16x6xbf16>
    %c0_1 = arith.constant 0 : index
    %c0_2 = arith.constant 0 : index
    %1 = vector.load %arg1[%c0_1, %c0_2] : memref<6x32xbf16, #tpu.memory_space<vmem>>, vector<6x32xbf16>
    %cst = arith.constant dense<0.000000e+00> : vector<16x32xf32>
    %2 = tpu.matmul %0, %1, %cst {dimension_numbers = #tpu.dot_dimension_numbers<[1], [0], [0], [1], [0, 0, 1, 1], [], []>} : vector<16x6xbf16>, vector<6x32xbf16>, vector<16x32xf32> -> vector<16x32xf32>
    %3 = arith.truncf %2 : vector<16x32xf32> to vector<16x32xbf16>
    %c0_3 = arith.constant 0 : index
    %c0_4 = arith.constant 0 : index
    %4 = vector.load %arg4[%c0_3, %c0_4] : memref<16x32xbf16, #tpu.memory_space<vmem>>, vector<16x32xbf16>
    tpu.vector_store %arg4[%c0_3, %c0_4], %3 {strides = array<i32>} : memref<16x32xbf16, #tpu.memory_space<vmem>>, vector<16x32xbf16>,
    %c0_5 = arith.constant 0 : index
    %c0_6 = arith.constant 0 : index
    %5 = vector.load %arg2[%c0_5, %c0_6] : memref<6x4xbf16, #tpu.memory_space<vmem>>, vector<6x4xbf16>
    %cst_7 = arith.constant dense<0.000000e+00> : vector<16x4xf32>
    %6 = tpu.matmul %0, %5, %cst_7 {dimension_numbers = #tpu.dot_dimension_numbers<[1], [0], [0], [1], [0, 0, 1, 1], [], []>} : vector<16x6xbf16>, vector<6x4xbf16>, vector<16x4xf32> -> vector<16x4xf32>
    %7 = arith.truncf %6 : vector<16x4xf32> to vector<16x4xbf16>
    %c0_8 = arith.constant 0 : index
    %c0_9 = arith.constant 0 : index
    %8 = vector.load %arg5[%c0_8, %c0_9] : memref<16x4xbf16, #tpu.memory_space<vmem>>, vector<16x4xbf16>
    tpu.vector_store %arg5[%c0_8, %c0_9], %7 {strides = array<i32>} : memref<16x4xbf16, #tpu.memory_space<vmem>>, vector<16x4xbf16>,
    %c0_10 = arith.constant 0 : index
    %c0_11 = arith.constant 0 : index
    %9 = vector.load %arg3[%c0_10, %c0_11] : memref<6x4xbf16, #tpu.memory_space<vmem>>, vector<6x4xbf16>
    %cst_12 = arith.constant dense<0.000000e+00> : vector<16x4xf32>
    %10 = tpu.matmul %0, %9, %cst_12 {dimension_numbers = #tpu.dot_dimension_numbers<[1], [0], [0], [1], [0, 0, 1, 1], [], []>} : vector<16x6xbf16>, vector<6x4xbf16>, vector<16x4xf32> -> vector<16x4xf32>
    %11 = arith.truncf %10 : vector<16x4xf32> to vector<16x4xbf16>
    %c0_13 = arith.constant 0 : index
    %c0_14 = arith.constant 0 : index
    %12 = vector.load %arg6[%c0_13, %c0_14] : memref<16x4xbf16, #tpu.memory_space<vmem>>, vector<16x4xbf16>
    tpu.vector_store %arg6[%c0_13, %c0_14], %11 {strides = array<i32>} : memref<16x4xbf16, #tpu.memory_space<vmem>>, vector<16x4xbf16>,
    return
  }
}

</mosaic_0001>

<llo_original>
// kernel: tpu_custom_call.1
$region0: #{tpu_custom_call.1}
  #allocation0 [shape = 'u32[]', space=smem, size = 0x4, offset = 0x4, fixed_abs, tag = 'smem constant byte address 0x4 - core index']
  #allocation1 [shape = 'u32[144,128]{1,0:T(1,128)}', space=vmem, size = 0x12000, scoped, tag = 'internal scratch']
  %s0 = inlined_call_operand.vmem [shape: bf16[16,6], index: 0, kind: input, shape index: {}]
  %s1 = inlined_call_operand.vmem [shape: bf16[6,32], index: 1, kind: input, shape index: {}]
  %s2 = inlined_call_operand.vmem [shape: bf16[6,4], index: 2, kind: input, shape index: {}]
  %s3 = inlined_call_operand.vmem [shape: bf16[6,4], index: 3, kind: input, shape index: {}]
  %s4 = inlined_call_operand.hbm [shape: bf16[16,32], index: 4, kind: output, shape index: {0}]
  %s5 = inlined_call_operand.vmem [shape: bf16[16,4], index: 5, kind: output, shape index: {1}]
  %s6 = inlined_call_operand.vmem [shape: bf16[16,4], index: 6, kind: output, shape index: {2}]
  %7 = xla_tuple %s4, %s5, %s6
  %s8 = sld [smem:[#allocation0]]
  $region42: #{tpu_custom_call.1} parent=0
    _
  %s10 = ssub.s32 1, %s8
  %s11 = scalar_select 0, %s10, %s8
  $region1: #{tpu_custom_call.1} parent=0
    #allocation2 [shape = 'u8[4096]{0}', space=vmem, size = 0x1000, scoped, tag = 'output window, operand 0, single buffered']
    #allocation3 [shape = 's32[1]{0}', space=sflag, size = 0x4, scoped, tag = 'scoped memory for tpu_custom_call.1']
    %12 = vsyncpa [#allocation3], 0
    // Predicated region
    $region2: #{tpu_custom_call.1} parent=1 // pred_check
      _
    $region3: #{tpu_custom_call.1} parent=1 // pred_check_branch
      %14 = sbr.rel (0) target = $region5
    $region4: #{tpu_custom_call.1} parent=1 // pred_region
      _
    $region5: #{tpu_custom_call.1} parent=1 // pred_fallthru
      _
    // Predicated region
    $region6: #{tpu_custom_call.1} parent=1 // pred_check
      _
    $region7: #{tpu_custom_call.1} parent=1 // pred_check_branch
      %16 = sbr.rel (0) target = $region9
    $region8: #{tpu_custom_call.1} parent=1 // pred_region
      _
    $region9: #{tpu_custom_call.1} parent=1 // pred_fallthru
      _
    // Predicated region
    $region10: #{tpu_custom_call.1} parent=1 // pred_check
      _
    $region11: #{tpu_custom_call.1} parent=1 // pred_check_branch
      %18 = sbr.rel (0) target = $region13
    $region12: #{tpu_custom_call.1} parent=1 // pred_region
      _
    $region13: #{tpu_custom_call.1} parent=1 // pred_fallthru
      _
    // Predicated region
    $region14: #{tpu_custom_call.1} parent=1 // pred_check
      _
    $region15: #{tpu_custom_call.1} parent=1 // pred_check_branch
      %20 = sbr.rel (0) target = $region17
    $region16: #{tpu_custom_call.1} parent=1 // pred_region
      _
    $region17: #{tpu_custom_call.1} parent=1 // pred_fallthru
      _
    %v22 = vld [vmem:[%s0] sm:$0xf]
    %v23 = vld [vmem:[%s0 + $0x4] sm:$0xf]
    %v24 = vld [vmem:[%s1] sm:$0x7]
    %v27 = vunpack.c.l.b16 %v22
    %v28 = vunpack.c.l.b16 %v23
    %v29 = vpack.c.b16 %v28, %v27
    %vm30 = vcmask 48128
    %v32 = vsel %vm30, %v29, 0
    %vm34 = vcmask 1042432
    %v36 = vsel %vm34, %v24, 0
    %38 = vmatprep.subr.bf16.mxu0 0
    %39 = vmatpush1.bf16.msra.mxu0 0
    %40 = vmatprep.subr.bf16.mxu0 0
    %41 = vmatpush1.bf16.msra.mxu0 0
    %42 = vmatprep.subr.bf16.mxu0 0
    %43 = vmatpush1.bf16.msra.mxu0 0
    %44 = vmatprep.subr.bf16.mxu0 0
    %45 = vmatpush1.bf16.msra.mxu0 0
    %46 = vmatprep.subr.bf16.mxu0 0
    %47 = vmatpush1.bf16.msra.mxu0 0
    %48 = vmatprep.subr.bf16.mxu0 0
    %49 = vmatpush1.bf16.msra.mxu0 0
    %50 = vmatprep.subr.bf16.mxu0 0
    %51 = vmatpush1.bf16.msra.mxu0 0
    %52 = vmatprep.subr.bf16.mxu0 0
    %53 = vmatpush1.bf16.msra.mxu0 %v36
    %54 = vmatprep.subr.bf16.mxu0 0
    %55 = vmatpush2.bf16.msra.mxu0 0
    %56 = vmatprep.subr.bf16.mxu0 0
    %57 = vmatpush2.bf16.msra.mxu0 0
    %58 = vmatprep.subr.bf16.mxu0 0
    %59 = vmatpush2.bf16.msra.mxu0 0
    %60 = vmatprep.subr.bf16.mxu0 0
    %61 = vmatpush2.bf16.msra.mxu0 0
    %62 = vmatprep.subr.bf16.mxu0 0
    %63 = vmatpush2.bf16.msra.mxu0 0
    %64 = vmatprep.subr.bf16.mxu0 0
    %65 = vmatpush2.bf16.msra.mxu0 0
    %66 = vmatprep.subr.bf16.mxu0 0
    %67 = vmatpush2.bf16.msra.mxu0 0
    %68 = vmatprep.subr.bf16.mxu0 0
    %69 = vmatpush2.bf16.msra.mxu0 0
    %70 = vmatprep.mubr.bf16.mxu0 0
    %71 = vmatmul.mubr.bf16.gmra.mxu0 %v32
    %v72 = vpop.f32.mrf.mxu0
    %v73 = vadd.f32 0.0, %v72
    %v74 = vpop.f32.mrf.mxu0
    %v75 = vpop.f32.mrf.mxu0
    %v76 = vadd.f32 0.0, %v75
    %v77 = vpop.f32.mrf.mxu0
    %78 = vdwg.mxu0
    %v79 = vpack.c.bf16 %v76, %v73
    %v81 = vunpack.c.l.b16 %v79
    %v82 = vunpack.c.h.b16 %v79
    %v83 = vpack.c.b16 %v81, %v81
    %v84 = vpack.c.b16 %v82, %v82
    %vm87 = vcmask 257024
    %88 = vst.msk [vmem:[#allocation2] sm:$0xf] %vm87, %v83
    %89 = vst.msk [vmem:[#allocation2 + $0x4] sm:$0xf] %vm87, %v84
    %v90 = vld [vmem:[%s2] sm:$0x7]
    %v92 = vsel %vm34, %v90, 0
    %94 = vmatprep.subr.bf16.mxu0 0
    %95 = vmatpush1.bf16.msra.mxu0 0
    %96 = vmatprep.subr.bf16.mxu0 0
    %97 = vmatpush1.bf16.msra.mxu0 0
    %98 = vmatprep.subr.bf16.mxu0 0
    %99 = vmatpush1.bf16.msra.mxu0 0
    %100 = vmatprep.subr.bf16.mxu0 0
    %101 = vmatpush1.bf16.msra.mxu0 0
    %102 = vmatprep.subr.bf16.mxu0 0
    %103 = vmatpush1.bf16.msra.mxu0 0
    %104 = vmatprep.subr.bf16.mxu0 0
    %105 = vmatpush1.bf16.msra.mxu0 0
    %106 = vmatprep.subr.bf16.mxu0 0
    %107 = vmatpush1.bf16.msra.mxu0 0
    %108 = vmatprep.subr.bf16.mxu0 0
    %109 = vmatpush1.bf16.msra.mxu0 %v92
    %110 = vmatprep.subr.bf16.mxu0 0
    %111 = vmatpush2.bf16.msra.mxu0 0
    %112 = vmatprep.subr.bf16.mxu0 0
    %113 = vmatpush2.bf16.msra.mxu0 0
    %114 = vmatprep.subr.bf16.mxu0 0
    %115 = vmatpush2.bf16.msra.mxu0 0
    %116 = vmatprep.subr.bf16.mxu0 0
    %117 = vmatpush2.bf16.msra.mxu0 0
    %118 = vmatprep.subr.bf16.mxu0 0
    %119 = vmatpush2.bf16.msra.mxu0 0
    %120 = vmatprep.subr.bf16.mxu0 0
    %121 = vmatpush2.bf16.msra.mxu0 0
    %122 = vmatprep.subr.bf16.mxu0 0
    %123 = vmatpush2.bf16.msra.mxu0 0
    %124 = vmatprep.subr.bf16.mxu0 0
    %125 = vmatpush2.bf16.msra.mxu0 0
    %126 = vmatprep.mubr.bf16.mxu0 0
    %127 = vmatmul.mubr.bf16.gmra.mxu0 %v32
    %v128 = vpop.f32.mrf.mxu0
    %v129 = vadd.f32 0.0, %v128
    %v130 = vpop.f32.mrf.mxu0
    %v131 = vpop.f32.mrf.mxu0
    %v132 = vadd.f32 0.0, %v131
    %v133 = vpop.f32.mrf.mxu0
    %134 = vdwg.mxu0
    %v135 = vpack.c.bf16 %v132, %v129
    %v137 = vunpack.c.l.b16 %v135
    %v138 = vunpack.c.h.b16 %v135
    %v139 = vpack.c.b16 %v137, %v137
    %v140 = vpack.c.b16 %v138, %v138
    %vm143 = vcmask 27648
    %144 = vst.msk [vmem:[%s5] sm:$0xf] %vm143, %v139
    %145 = vst.msk [vmem:[%s5 + $0x4] sm:$0xf] %vm143, %v140
    %v146 = vld [vmem:[%s3] sm:$0x7]
    %v148 = vsel %vm34, %v146, 0
    %150 = vmatprep.subr.bf16.mxu0 0
    %151 = vmatpush1.bf16.msra.mxu0 0
    %152 = vmatprep.subr.bf16.mxu0 0
    %153 = vmatpush1.bf16.msra.mxu0 0
    %154 = vmatprep.subr.bf16.mxu0 0
    %155 = vmatpush1.bf16.msra.mxu0 0
    %156 = vmatprep.subr.bf16.mxu0 0
    %157 = vmatpush1.bf16.msra.mxu0 0
    %158 = vmatprep.subr.bf16.mxu0 0
    %159 = vmatpush1.bf16.msra.mxu0 0
    %160 = vmatprep.subr.bf16.mxu0 0
    %161 = vmatpush1.bf16.msra.mxu0 0
    %162 = vmatprep.subr.bf16.mxu0 0
    %163 = vmatpush1.bf16.msra.mxu0 0
    %164 = vmatprep.subr.bf16.mxu0 0
    %165 = vmatpush1.bf16.msra.mxu0 %v148
    %166 = vmatprep.subr.bf16.mxu0 0
    %167 = vmatpush2.bf16.msra.mxu0 0
    %168 = vmatprep.subr.bf16.mxu0 0
    %169 = vmatpush2.bf16.msra.mxu0 0
    %170 = vmatprep.subr.bf16.mxu0 0
    %171 = vmatpush2.bf16.msra.mxu0 0
    %172 = vmatprep.subr.bf16.mxu0 0
    %173 = vmatpush2.bf16.msra.mxu0 0
    %174 = vmatprep.subr.bf16.mxu0 0
    %175 = vmatpush2.bf16.msra.mxu0 0
    %176 = vmatprep.subr.bf16.mxu0 0
    %177 = vmatpush2.bf16.msra.mxu0 0
    %178 = vmatprep.subr.bf16.mxu0 0
    %179 = vmatpush2.bf16.msra.mxu0 0
    %180 = vmatprep.subr.bf16.mxu0 0
    %181 = vmatpush2.bf16.msra.mxu0 0
    %182 = vmatprep.mubr.bf16.mxu0 0
    %183 = vmatmul.mubr.bf16.gmra.mxu0 %v32
    %v184 = vpop.f32.mrf.mxu0
    %v185 = vadd.f32 0.0, %v184
    %v186 = vpop.f32.mrf.mxu0
    %v187 = vpop.f32.mrf.mxu0
    %v188 = vadd.f32 0.0, %v187
    %v189 = vpop.f32.mrf.mxu0
    %190 = vdwg.mxu0
    %v191 = vpack.c.bf16 %v188, %v185
    %v193 = vunpack.c.l.b16 %v191
    %v194 = vunpack.c.h.b16 %v191
    %v195 = vpack.c.b16 %v193, %v193
    %v196 = vpack.c.b16 %v194, %v194
    %199 = vst.msk [vmem:[%s6] sm:$0xf] %vm143, %v195
    %200 = vst.msk [vmem:[%s6 + $0x4] sm:$0xf] %vm143, %v196
    // Predicated region
    $region18: #{tpu_custom_call.1} parent=1 // pred_check
      _
    $region19: #{tpu_custom_call.1} parent=1 // pred_check_branch
      %202 = sbr.rel (0) target = $region21
    $region20: #{tpu_custom_call.1} parent=1 // pred_region
      %s204 = ssub.s32 128, 128
      %205 = vsyncadd [#allocation3], %s204
      %s206 = sshll.u32 [#allocation2], 4
      %s207 = int_to_ptr.vmem [resolvable:$true] %s206
      %212 = dma.vmem_to_hbm [thread:$0]  %s207, 128, %s4, [#allocation3], 64, 64, 4
    $region21: #{tpu_custom_call.1} parent=1 // pred_fallthru
      _
    // Predicated region
    $region22: #{tpu_custom_call.1} parent=1 // pred_check
      _
    $region23: #{tpu_custom_call.1} parent=1 // pred_check_branch
      %214 = sbr.rel (0) target = $region25
    $region24: #{tpu_custom_call.1} parent=1 // pred_region
      _
    $region25: #{tpu_custom_call.1} parent=1 // pred_fallthru
      _
    // Predicated region
    $region26: #{tpu_custom_call.1} parent=1 // pred_check
      _
    $region27: #{tpu_custom_call.1} parent=1 // pred_check_branch
      %216 = sbr.rel (0) target = $region29
    $region28: #{tpu_custom_call.1} parent=1 // pred_region
      _
    $region29: #{tpu_custom_call.1} parent=1 // pred_fallthru
      _
    // Predicated region
    $region30: #{tpu_custom_call.1} parent=1 // pred_check
      _
    $region31: #{tpu_custom_call.1} parent=1 // pred_check_branch
      %218 = sbr.rel (0) target = $region33
    $region32: #{tpu_custom_call.1} parent=1 // pred_region
      %219 = dma.done [#allocation3], 128
    $region33: #{tpu_custom_call.1} parent=1 // pred_fallthru
      _
    // Predicated region
    $region34: #{tpu_custom_call.1} parent=1 // pred_check
      _
    $region35: #{tpu_custom_call.1} parent=1 // pred_check_branch
      %221 = sbr.rel (0) target = $region37
    $region36: #{tpu_custom_call.1} parent=1 // pred_region
      _
    $region37: #{tpu_custom_call.1} parent=1 // pred_fallthru
      _
    // Predicated region
    $region38: #{tpu_custom_call.1} parent=1 // pred_check
      _
    $region39: #{tpu_custom_call.1} parent=1 // pred_check_branch
      %223 = sbr.rel (0) target = $region41
    $region40: #{tpu_custom_call.1} parent=1 // pred_region
      _
    $region41: #{tpu_custom_call.1} parent=1 // pred_fallthru
      _
    %224 = vsyncpa [#allocation3], 1

</llo_original>
